<compile_context>
chip_gen: v7x
topology: tpu7x:2x2x1
jax: 0.10.0
libtpu: 0.0.40
codegen_flags: <defaults>
</compile_context>

<pallas_src>
import jax
import jax.numpy as jnp
from jax.experimental import pallas as pl
from jax.experimental.pallas import tpu as pltpu

LANE = 128
SUBLANE = 8
MIN_BLOCK_ROWS = 256        # floor: avoid tiny tiles (per-grid-step overhead ~0.35us)
DEFAULT_BLOCK_ROWS = 2048   # ~1 MiB f32 tile


def _round_up(x, m):
    return ((x + m - 1) // m) * m


def linear_kernel(w_ref, b_ref, x_ref, o_ref):
    # w_ref, b_ref: (1,) f32 scalars in SMEM; x_ref/o_ref: (rows, 128) lane-dense
    # VMEM tiles. Pure VPU FMA in x's dtype (bf16 on v6e/v7x when x is bf16).
    w = w_ref[0].astype(x_ref.dtype)
    b = b_ref[0].astype(x_ref.dtype)
    o_ref[...] = (x_ref[...] * w + b).astype(o_ref.dtype)


def _pick_block_rows(block_rows, itemsize):
    # Floor: never run the grid path with tiny tiles.
    block_rows = max(int(block_rows), MIN_BLOCK_ROWS)
    # VMEM-aware cap: triple-buffered input + double-buffered output tiles,
    # kept well under the scoped VMEM limit of any generation.
    try:
        vmem_bytes = pltpu.get_tpu_info().vmem_capacity_bytes
    except Exception:
        vmem_bytes = 64 << 20  # conservative (v7x physical size)
    budget = vmem_bytes // 4
    cap = budget // ((3 + 2) * LANE * itemsize)
    cap = max(MIN_BLOCK_ROWS, (cap // SUBLANE) * SUBLANE)
    return min(block_rows, cap)


def linear_forward(x, weight, bias, *, block_rows=DEFAULT_BLOCK_ROWS):
    """y = x @ weight.T + bias for nn.Linear(1, 1)-shaped params.

    x: (N, 1), weight: (1, 1), bias: (1,)  ->  (N, 1)
    """
    n, in_f = x.shape
    out_f, in_f_w = weight.shape
    assert in_f == 1 and out_f == 1 and in_f_w == 1
    dtype = x.dtype
    itemsize = jnp.dtype(dtype).itemsize

    block_rows = _pick_block_rows(block_rows, itemsize)

    # Scalars live in SMEM as f32; cast to the compute dtype inside the kernel.
    w = weight.reshape(1).astype(jnp.float32)
    b = bias.reshape(1).astype(jnp.float32)

    # Lane-dense slab: (rows, 128).
    xf = x.reshape(-1)
    rows = max(pl.cdiv(n, LANE), 1) if n > 0 else 1

    if rows <= block_rows:
        # Whole problem fits in a single VMEM tile: no grid, no pipelining.
        rows_p = rows
        padded = rows_p * LANE
        if padded != n:
            xf = jnp.pad(xf, (0, padded - n))
        x2 = xf.reshape(rows_p, LANE)
        out2 = pl.pallas_call(
            linear_kernel,
            out_shape=jax.ShapeDtypeStruct((rows_p, LANE), dtype),
            in_specs=[
                pl.BlockSpec(memory_space=pltpu.MemorySpace.SMEM),
                pl.BlockSpec(memory_space=pltpu.MemorySpace.SMEM),
                pl.BlockSpec(memory_space=pltpu.MemorySpace.VMEM),
            ],
            out_specs=pl.BlockSpec(memory_space=pltpu.MemorySpace.VMEM),
        )(w, b, x2)
    else:
        # Grid path: pad only to a sublane multiple (NOT a block_rows multiple);
        # the ragged last block is masked automatically by Pallas because the
        # (block_rows, 128) block shape satisfies the (8, 128) rule.
        rows_p = _round_up(rows, SUBLANE)
        padded = rows_p * LANE
        if padded != n:
            xf = jnp.pad(xf, (0, padded - n))
        x2 = xf.reshape(rows_p, LANE)
        grid_rows = pl.cdiv(rows_p, block_rows)  # >= 2 here since rows > block_rows
        out2 = pl.pallas_call(
            linear_kernel,
            out_shape=jax.ShapeDtypeStruct((rows_p, LANE), dtype),
            grid=(grid_rows,),
            in_specs=[
                pl.BlockSpec(memory_space=pltpu.MemorySpace.SMEM),
                pl.BlockSpec(memory_space=pltpu.MemorySpace.SMEM),
                pl.BlockSpec((block_rows, LANE), lambda i: (i, 0),
                             pipeline_mode=pl.Buffered(3)),
            ],
            out_specs=pl.BlockSpec((block_rows, LANE), lambda i: (i, 0)),
            compiler_params=pltpu.CompilerParams(
                dimension_semantics=("parallel",),
            ),
        )(w, b, x2)

    if padded == n:
        # Lane-aligned input: reshape is free, no extra HBM slice pass.
        return out2.reshape(n, out_f)
    return out2.reshape(-1)[:n].reshape(n, out_f)


if __name__ == "__main__":
    key = jax.random.PRNGKey(0)
    kx, kw, kb, kx2, kx3 = jax.random.split(key, 5)

    # nn.Linear(1, 1): weight (1,1), bias (1,), init uniform(-1, 1) (bound = 1/sqrt(1) = 1)
    weight = jax.random.uniform(kw, (1, 1), dtype=jnp.float32, minval=-1.0, maxval=1.0)
    bias = jax.random.uniform(kb, (1,), dtype=jnp.float32, minval=-1.0, maxval=1.0)

    # 1) Small ragged batch (single-tile path, padded tail).
    x = jax.random.normal(kx, (8, 1), dtype=jnp.float32)
    y = linear_forward(x, weight, bias)
    jax.block_until_ready(y)
    y_ref = x @ weight.T + bias
    assert y.shape == y_ref.shape
    assert jnp.allclose(y, y_ref, atol=1e-6), "mismatch vs reference (small batch)"

    # 2) Lane-aligned batch (single-tile path, zero padding, free reshape return).
    x_al = jax.random.normal(kx3, (1024, 1), dtype=jnp.float32)
    y_al = linear_forward(x_al, weight, bias)
    jax.block_until_ready(y_al)
    y_al_ref = x_al @ weight.T + bias
    assert jnp.allclose(y_al, y_al_ref, atol=1e-6), "mismatch vs reference (aligned)"

    # 3) Grid path with a ragged tail: block_rows floor of 256 rows, multiple
    #    grid steps, ragged last block masked by Pallas.
    n_big = 2 * MIN_BLOCK_ROWS * LANE + 51  # 65587 elements -> 3 grid steps
    x_big = jax.random.normal(kx2, (n_big, 1), dtype=jnp.float32)
    y_big = linear_forward(x_big, weight, bias, block_rows=MIN_BLOCK_ROWS)
    jax.block_until_ready(y_big)
    y_big_ref = x_big @ weight.T + bias
    assert jnp.allclose(y_big, y_big_ref, atol=1e-6), "mismatch vs reference (tiled)"

    print("KERNEL_OK")
</pallas_src>

<mosaic_0001>
module attributes {stable_mosaic.version = 11 : i64} {
  func.func @linear_kernel(%arg0: memref<1xf32, #tpu.memory_space<smem>>, %arg1: memref<1xf32, #tpu.memory_space<smem>>, %arg2: memref<1x128xf32, #tpu.memory_space<vmem>>, %arg3: memref<1x128xf32, #tpu.memory_space<vmem>>) attributes {dimension_semantics = [], scalar_prefetch = 0 : i64, scratch_operands = 0 : i64, tpu.core_type = #tpu.core_type<tc>} {
    %c0 = arith.constant 0 : index
    %0 = memref.load %arg0[%c0] : memref<1xf32, #tpu.memory_space<smem>>
    %c0_0 = arith.constant 0 : index
    %1 = memref.load %arg1[%c0_0] : memref<1xf32, #tpu.memory_space<smem>>
    %c0_1 = arith.constant 0 : index
    %c0_2 = arith.constant 0 : index
    %2 = vector.load %arg2[%c0_1, %c0_2] : memref<1x128xf32, #tpu.memory_space<vmem>>, vector<1x128xf32>
    %3 = vector.broadcast %0 : f32 to vector<1x128xf32>
    %4 = arith.mulf %2, %3 : vector<1x128xf32>
    %5 = vector.broadcast %1 : f32 to vector<1x128xf32>
    %6 = arith.addf %4, %5 : vector<1x128xf32>
    %c0_3 = arith.constant 0 : index
    %c0_4 = arith.constant 0 : index
    %7 = vector.load %arg3[%c0_3, %c0_4] : memref<1x128xf32, #tpu.memory_space<vmem>>, vector<1x128xf32>
    tpu.vector_store %arg3[%c0_3, %c0_4], %6 {strides = array<i32>} : memref<1x128xf32, #tpu.memory_space<vmem>>, vector<1x128xf32>,
    return
  }
}

</mosaic_0001>

<llo_original>
// kernel: tpu_custom_call.1
$region0: #{tpu_custom_call.1}
  #allocation0 [shape = 'u32[]', space=smem, size = 0x4, offset = 0x4, fixed_abs, tag = 'smem constant byte address 0x4 - core index']
  #allocation1 [shape = 'u32[144,128]{1,0:T(1,128)}', space=vmem, size = 0x12000, scoped, tag = 'internal scratch']
  #allocation2 [shape = 'f32[1]{0:T(128)S(6)}', space=smem, size = 0x200, scoped, tag = 'scoped memory for tpu_custom_call.1']
  #allocation3 [shape = 'f32[1]{0:T(128)S(6)}', space=smem, size = 0x200, scoped, tag = 'scoped memory for tpu_custom_call.1']
  %s0 = inlined_call_operand.<no memory space> [shape: f32[1], index: 0, kind: input, shape index: {}]
  %s1 = inlined_call_operand.<no memory space> [shape: f32[1], index: 1, kind: input, shape index: {}]
  %s2 = inlined_call_operand.vmem [shape: f32[1,128], index: 2, kind: input, shape index: {}]
  %s3 = inlined_call_operand.hbm [shape: f32[1,128], index: 3, kind: output, shape index: {}]
  %s4 = sld [smem:[#allocation0]]
  $region22: #{tpu_custom_call.1} parent=0
    _
  %s6 = ssub.s32 1, %s4
  %s7 = scalar_select 0, %s6, %s4
  %8 = sst [smem:[#allocation2]] %s0
  %9 = sst [smem:[#allocation3]] %s1
  $region1: #{tpu_custom_call.1} parent=0
    #allocation4 [shape = 'u8[512]{0}', space=vmem, size = 0x400, scoped, tag = 'output window, operand 0, single buffered']
    #allocation5 [shape = 's32[1]{0}', space=sflag, size = 0x4, scoped, tag = 'scoped memory for tpu_custom_call.1']
    %10 = vsyncpa [#allocation5], 0
    // Predicated region
    $region2: #{tpu_custom_call.1} parent=1 // pred_check
      _
    $region3: #{tpu_custom_call.1} parent=1 // pred_check_branch
      %12 = sbr.rel (0) target = $region5
    $region4: #{tpu_custom_call.1} parent=1 // pred_region
      _
    $region5: #{tpu_custom_call.1} parent=1 // pred_fallthru
      _
    // Predicated region
    $region6: #{tpu_custom_call.1} parent=1 // pred_check
      _
    $region7: #{tpu_custom_call.1} parent=1 // pred_check_branch
      %14 = sbr.rel (0) target = $region9
    $region8: #{tpu_custom_call.1} parent=1 // pred_region
      _
    $region9: #{tpu_custom_call.1} parent=1 // pred_fallthru
      _
    // Predicated region
    $region10: #{tpu_custom_call.1} parent=1 // pred_check
      _
    $region11: #{tpu_custom_call.1} parent=1 // pred_check_branch
      %16 = sbr.rel (0) target = $region13
    $region12: #{tpu_custom_call.1} parent=1 // pred_region
      _
    $region13: #{tpu_custom_call.1} parent=1 // pred_fallthru
      _
    %s17 = sld [smem:[#allocation2]]
    %s18 = sld [smem:[#allocation3]]
    %v19 = vld [vmem:[%s2] sm:$0x1]
    %v20 = vstv %s17
    %v21 = vmul.f32 %v19, %v20
    %v22 = vstv %s18
    %v23 = vadd.f32 %v21, %v22
    %24 = vst [vmem:[#allocation4] sm:$0x1] %v23
    // Predicated region
    $region14: #{tpu_custom_call.1} parent=1 // pred_check
      _
    $region15: #{tpu_custom_call.1} parent=1 // pred_check_branch
      %26 = sbr.rel (0) target = $region17
    $region16: #{tpu_custom_call.1} parent=1 // pred_region
      %s28 = ssub.s32 16, 16
      %29 = vsyncadd [#allocation5], %s28
      %s31 = sshll.u32 [#allocation4], 4
      %s32 = int_to_ptr.vmem [resolvable:$true] %s31
      %34 = dma.vmem_to_hbm [thread:$0]  %s32, 16, %s3, [#allocation5]
    $region17: #{tpu_custom_call.1} parent=1 // pred_fallthru
      _
    // Predicated region
    $region18: #{tpu_custom_call.1} parent=1 // pred_check
      _
    $region19: #{tpu_custom_call.1} parent=1 // pred_check_branch
      %36 = sbr.rel (0) target = $region21
    $region20: #{tpu_custom_call.1} parent=1 // pred_region
      %37 = dma.done [#allocation5], 16
    $region21: #{tpu_custom_call.1} parent=1 // pred_fallthru
      _
    %38 = vsyncpa [#allocation5], 1

</llo_original>
